<compile_context>
chip_gen: v7x
topology: tpu7x:2x2x1
jax: 0.10.0
libtpu: 0.0.40
codegen_flags: <defaults>
</compile_context>

<pallas_src>
import numpy as np

import jax
import jax.numpy as jnp
from jax.experimental import pallas as pl
from jax.experimental.pallas import tpu as pltpu  # noqa: F401  (kept for TPU backend)

EPS = 1e-5


def _double_conv_kernel(x_ref,                    # (Hp*N, W*Cin)  H-haloed, lane-folded
                        b1_ref, b2_ref,           # (3*W*Cin, LM), (3*LM, W*Cout)
                        g1_ref, be1_ref,          # (1, Cmid), (1, Cmid)
                        g2_ref, be2_ref,          # (1, Cout), (1, Cout)
                        s1_ref, s1t_ref,          # (LM, Cmid), (Cmid, LM)
                        s2_ref, s2t_ref,          # (W*Cout, Cout), (Cout, W*Cout)
                        out_ref):                 # (H*N, W*Cout)  lane-dense output
    HpN, _ = x_ref.shape
    M, WCout = out_ref.shape                      # M = H*N
    LM = s1_ref.shape[0]                          # padded mid lane width (128)
    Cout = g2_ref.shape[-1]
    N = (HpN - M) // 2                            # batch size (2 halo rows per image)
    H = M // N
    W = WCout // Cout
    inv_n = 1.0 / float(N * H * W)

    # ---- conv1: one fused-K MXU matmul (K = 3*W*Cin); W halo is encoded in b1 ----
    xv = x_ref[...]                                                    # (Hp*N, W*Cin)
    lhs1 = jnp.concatenate([xv[ky * N: ky * N + M, :] for ky in range(3)], axis=1)
    acc1 = jnp.dot(lhs1, b1_ref[...], preferred_element_type=jnp.float32)   # (M, LM)

    # ---- BatchNorm1 (training-mode batch stats, single pass) + ReLU ----
    stats1 = jnp.concatenate(
        [jnp.sum(acc1, axis=0, keepdims=True),
         jnp.sum(acc1 * acc1, axis=0, keepdims=True)], axis=0)         # (2, LM)
    st1 = jnp.dot(stats1, s1_ref[...], preferred_element_type=jnp.float32) * inv_n
    mean1 = st1[0:1]                                                   # (1, Cmid)
    var1 = jnp.maximum(st1[1:2] - mean1 * mean1, 0.0)                  # biased variance
    scale1 = g1_ref[...] * jax.lax.rsqrt(var1 + EPS)
    shift1 = be1_ref[...] - mean1 * scale1
    ss1 = jnp.dot(jnp.concatenate([scale1, shift1], axis=0), s1t_ref[...],
                  preferred_element_type=jnp.float32)                  # (2, LM)
    y = jnp.maximum(acc1 * ss1[0:1] + ss1[1:2], 0.0)  # pad lanes stay exactly zero

    # ---- conv2: one fused-K MXU matmul (K = 3*LM); H halo = shifted windows of y ----
    z = jnp.zeros((N, LM), jnp.float32)
    lhs2 = jnp.concatenate(
        [jnp.concatenate([z, y[: M - N, :]], axis=0),                  # ky = 0 (h-1)
         y,                                                            # ky = 1 (h)
         jnp.concatenate([y[N:, :], z], axis=0)], axis=1)              # ky = 2 (h+1)
    acc2 = jnp.dot(lhs2, b2_ref[...], preferred_element_type=jnp.float32)  # (M, W*Cout)

    # ---- BatchNorm2 + ReLU, lane-dense (W*Cout = 128 wide) store ----
    stats2 = jnp.concatenate(
        [jnp.sum(acc2, axis=0, keepdims=True),
         jnp.sum(acc2 * acc2, axis=0, keepdims=True)], axis=0)
    st2 = jnp.dot(stats2, s2_ref[...], preferred_element_type=jnp.float32) * inv_n
    mean2 = st2[0:1]
    var2 = jnp.maximum(st2[1:2] - mean2 * mean2, 0.0)
    scale2 = g2_ref[...] * jax.lax.rsqrt(var2 + EPS)
    shift2 = be2_ref[...] - mean2 * scale2
    ss2 = jnp.dot(jnp.concatenate([scale2, shift2], axis=0), s2t_ref[...],
                  preferred_element_type=jnp.float32)
    out_ref[...] = jnp.maximum(acc2 * ss2[0:1] + ss2[1:2], 0.0)


def _fold_params(w1, w2, W):
    """Lane-folded, ky-fused conv matrices and channel<->lane selection matrices.

    Conv biases are intentionally NOT folded: with training-mode BatchNorm directly
    after each conv they cancel exactly in the forward pass.
    """
    Cmid, Cin = w1.shape[0], w1.shape[1]
    Cout = w2.shape[0]
    LM = ((W * Cmid + 127) // 128) * 128          # padded mid lane width (96 -> 128)

    # T1[kx, wi, wo] = 1 iff input col wi == wo + kx - 1 (in range) -> implicit W pad.
    T1 = np.zeros((3, W, W), np.float32)
    for kx in range(3):
        for wo in range(W):
            wi = wo + kx - 1
            if 0 <= wi < W:
                T1[kx, wi, wo] = 1.0
    T1j = jnp.asarray(T1)

    w1_t = jnp.transpose(w1.astype(jnp.float32), (2, 3, 1, 0))   # (ky, kx, Cin, Cmid)
    w2_t = jnp.transpose(w2.astype(jnp.float32), (2, 3, 1, 0))   # (ky, kx, Cmid, Cout)

    # B1[ky*W*Cin + wi*Cin + ci, wo*Cmid + m]  (then pad out-lanes W*Cmid -> LM)
    B1 = jnp.einsum('xio,yxcm->yicom', T1j, w1_t).reshape(3 * W * Cin, W * Cmid)
    B1 = jnp.pad(B1, ((0, 0), (0, LM - W * Cmid)))               # (3*W*Cin, LM)

    # B2[ky*LM + wi*Cmid + m, wo*Cout + o]  (pad in-lanes W*Cmid -> LM per ky block)
    B2 = jnp.einsum('xio,yxmv->yimov', T1j, w2_t).reshape(3, W * Cmid, W * Cout)
    B2 = jnp.pad(B2, ((0, 0), (0, LM - W * Cmid), (0, 0))).reshape(3 * LM, W * Cout)

    # channel <-> folded-lane selection matrices
    S1 = np.zeros((LM, Cmid), np.float32)
    for w in range(W):
        S1[w * Cmid:(w + 1) * Cmid, :] = np.eye(Cmid, dtype=np.float32)
    S2 = np.tile(np.eye(Cout, dtype=np.float32), (W, 1))         # (W*Cout, Cout)

    return (B1, B2,
            jnp.asarray(S1), jnp.asarray(np.ascontiguousarray(S1.T)),
            jnp.asarray(S2), jnp.asarray(np.ascontiguousarray(S2.T)))


@jax.jit
def double_conv(x_nchw, w1, b1, g1, be1, w2, b2, g2, be2):
    """x_nchw: (N, Cin, H, W) float32 -> (N, Cout, H, W) float32.
    Matches PyTorch training-mode DoubleConv forward (batch statistics, biased var).
    b1/b2 are accepted for interface parity but are mathematically cancelled by the
    following training-mode BatchNorm, so they are not used."""
    del b1, b2
    N, Cin, H, W = x_nchw.shape
    Cmid = w1.shape[0]
    Cout = w2.shape[0]

    B1, B2, S1, S1t, S2, S2t = _fold_params(w1, w2, W)

    # NCHW -> lane-folded rows=(h, n), lanes=(w, c); H halo zero-padded in the wrapper
    # so the kernel needs no staging copy (the W halo lives in the folded weights).
    x_folded = jnp.transpose(x_nchw, (2, 0, 3, 1)).astype(jnp.float32)     # (H, N, W, Cin)
    x_folded = x_folded.reshape(H, N, W * Cin)
    x_padded = jnp.pad(x_folded, ((1, 1), (0, 0), (0, 0)))                 # (H+2, N, W*Cin)
    x2d = x_padded.reshape((H + 2) * N, W * Cin)

    out2d = pl.pallas_call(
        _double_conv_kernel,
        out_shape=jax.ShapeDtypeStruct((H * N, W * Cout), jnp.float32),
    )(x2d, B1, B2,
      g1.reshape(1, Cmid).astype(jnp.float32), be1.reshape(1, Cmid).astype(jnp.float32),
      g2.reshape(1, Cout).astype(jnp.float32), be2.reshape(1, Cout).astype(jnp.float32),
      S1, S1t, S2, S2t)

    out_hnwc = out2d.reshape(H, N, W, Cout)
    return jnp.transpose(out_hnwc, (1, 3, 0, 2))                           # back to NCHW


def double_conv_ref(x, w1, b1, g1, be1, w2, b2, g2, be2):
    """Pure-JAX reference matching PyTorch training-mode forward (bias included)."""
    def block(x, w, b, g, be):
        y = jax.lax.conv_general_dilated(
            x, w, window_strides=(1, 1), padding="SAME",
            dimension_numbers=("NCHW", "OIHW", "NCHW"))
        y = y + b[None, :, None, None]
        mean = jnp.mean(y, axis=(0, 2, 3), keepdims=True)
        var = jnp.mean((y - mean) ** 2, axis=(0, 2, 3), keepdims=True)
        y = g[None, :, None, None] * (y - mean) / jnp.sqrt(var + EPS) \
            + be[None, :, None, None]
        return jnp.maximum(y, 0.0)
    return block(block(x, w1, b1, g1, be1), w2, b2, g2, be2)


if __name__ == "__main__":
    key = jax.random.PRNGKey(0)
    N, Cin, H, W = 2, 4, 16, 16
    Cmid, Cout = 6, 8                     # DoubleConv(4, 8, mid_channels=6)

    ks = jax.random.split(key, 9)
    x = jax.random.normal(ks[0], (N, Cin, H, W), jnp.float32)
    w1 = jax.random.normal(ks[1], (Cmid, Cin, 3, 3), jnp.float32) * 0.2
    b1 = jax.random.normal(ks[2], (Cmid,), jnp.float32) * 0.1
    g1 = 1.0 + 0.1 * jax.random.normal(ks[3], (Cmid,), jnp.float32)
    be1 = 0.1 * jax.random.normal(ks[4], (Cmid,), jnp.float32)
    w2 = jax.random.normal(ks[5], (Cout, Cmid, 3, 3), jnp.float32) * 0.2
    b2 = jax.random.normal(ks[6], (Cout,), jnp.float32) * 0.1
    g2 = 1.0 + 0.1 * jax.random.normal(ks[7], (Cout,), jnp.float32)
    be2 = 0.1 * jax.random.normal(ks[8], (Cout,), jnp.float32)

    out = double_conv(x, w1, b1, g1, be1, w2, b2, g2, be2)
    out = jax.block_until_ready(out)

    ref = double_conv_ref(x, w1, b1, g1, be1, w2, b2, g2, be2)
    assert out.shape == (N, Cout, H, W)
    assert jnp.allclose(out, ref, atol=1e-4, rtol=1e-4), \
        f"max err {jnp.max(jnp.abs(out - ref))}"

    print("KERNEL_OK")
</pallas_src>

<mosaic_0001>
module attributes {stable_mosaic.version = 11 : i64} {
  func.func @_double_conv_kernel(%arg0: memref<36x64xf32, #tpu.memory_space<vmem>>, %arg1: memref<192x128xf32, #tpu.memory_space<vmem>>, %arg2: memref<384x128xf32, #tpu.memory_space<vmem>>, %arg3: memref<1x6xf32, #tpu.memory_space<vmem>>, %arg4: memref<1x6xf32, #tpu.memory_space<vmem>>, %arg5: memref<1x8xf32, #tpu.memory_space<vmem>>, %arg6: memref<1x8xf32, #tpu.memory_space<vmem>>, %arg7: memref<128x6xf32, #tpu.memory_space<vmem>>, %arg8: memref<6x128xf32, #tpu.memory_space<vmem>>, %arg9: memref<128x8xf32, #tpu.memory_space<vmem>>, %arg10: memref<8x128xf32, #tpu.memory_space<vmem>>, %arg11: memref<32x128xf32, #tpu.memory_space<vmem>>) attributes {dimension_semantics = [], scalar_prefetch = 0 : i64, scratch_operands = 0 : i64, tpu.core_type = #tpu.core_type<tc>} {
    %c0 = arith.constant 0 : index
    %c0_0 = arith.constant 0 : index
    %0 = vector.load %arg0[%c0, %c0_0] : memref<36x64xf32, #tpu.memory_space<vmem>>, vector<36x64xf32>
    %1 = vector.extract_strided_slice %0 {offsets = [0, 0], sizes = [32, 64], strides = [1, 1]} : vector<36x64xf32> to vector<32x64xf32>
    %2 = vector.extract_strided_slice %0 {offsets = [2, 0], sizes = [32, 64], strides = [1, 1]} : vector<36x64xf32> to vector<32x64xf32>
    %3 = vector.extract_strided_slice %0 {offsets = [4, 0], sizes = [32, 64], strides = [1, 1]} : vector<36x64xf32> to vector<32x64xf32>
    %4 = tpu.concatenate %1, %2, %3 in 1 : vector<32x64xf32>, vector<32x64xf32>, vector<32x64xf32> -> vector<32x192xf32>
    %c0_1 = arith.constant 0 : index
    %c0_2 = arith.constant 0 : index
    %5 = vector.load %arg1[%c0_1, %c0_2] : memref<192x128xf32, #tpu.memory_space<vmem>>, vector<192x128xf32>
    %cst = arith.constant dense<0.000000e+00> : vector<32x128xf32>
    %6 = tpu.matmul %4, %5, %cst {dimension_numbers = #tpu.dot_dimension_numbers<[1], [0], [0], [1], [0, 0, 1, 1], [], []>} : vector<32x192xf32>, vector<192x128xf32>, vector<32x128xf32> -> vector<32x128xf32>
    %cst_3 = arith.constant dense<0.000000e+00> : vector<128xf32>
    %7 = vector.multi_reduction <add>, %6, %cst_3 [0] : vector<32x128xf32> to vector<128xf32>
    %8 = vector.shape_cast %7 : vector<128xf32> to vector<1x128xf32>
    %9 = arith.mulf %6, %6 : vector<32x128xf32>
    %cst_4 = arith.constant dense<0.000000e+00> : vector<128xf32>
    %10 = vector.multi_reduction <add>, %9, %cst_4 [0] : vector<32x128xf32> to vector<128xf32>
    %11 = vector.shape_cast %10 : vector<128xf32> to vector<1x128xf32>
    %12 = tpu.concatenate %8, %11 in 0 : vector<1x128xf32>, vector<1x128xf32> -> vector<2x128xf32>
    %c0_5 = arith.constant 0 : index
    %c0_6 = arith.constant 0 : index
    %13 = vector.load %arg7[%c0_5, %c0_6] : memref<128x6xf32, #tpu.memory_space<vmem>>, vector<128x6xf32>
    %cst_7 = arith.constant dense<0.000000e+00> : vector<2x6xf32>
    %14 = tpu.matmul %12, %13, %cst_7 {dimension_numbers = #tpu.dot_dimension_numbers<[1], [0], [0], [1], [0, 0, 1, 1], [], []>} : vector<2x128xf32>, vector<128x6xf32>, vector<2x6xf32> -> vector<2x6xf32>
    %cst_8 = arith.constant 0.001953125 : f32
    %15 = vector.broadcast %cst_8 : f32 to vector<2x6xf32>
    %16 = arith.mulf %14, %15 : vector<2x6xf32>
    %17 = vector.extract_strided_slice %16 {offsets = [0, 0], sizes = [1, 6], strides = [1, 1]} : vector<2x6xf32> to vector<1x6xf32>
    %18 = vector.extract_strided_slice %16 {offsets = [1, 0], sizes = [1, 6], strides = [1, 1]} : vector<2x6xf32> to vector<1x6xf32>
    %19 = arith.mulf %17, %17 : vector<1x6xf32>
    %20 = arith.subf %18, %19 : vector<1x6xf32>
    %cst_9 = arith.constant 0.000000e+00 : f32
    %21 = vector.broadcast %cst_9 : f32 to vector<1x6xf32>
    %22 = arith.maximumf %20, %21 : vector<1x6xf32>
    %c0_10 = arith.constant 0 : index
    %c0_11 = arith.constant 0 : index
    %23 = vector.load %arg3[%c0_10, %c0_11] : memref<1x6xf32, #tpu.memory_space<vmem>>, vector<1x6xf32>
    %cst_12 = arith.constant 9.99999974E-6 : f32
    %24 = vector.broadcast %cst_12 : f32 to vector<1x6xf32>
    %25 = arith.addf %22, %24 : vector<1x6xf32>
    %26 = math.rsqrt %25 : vector<1x6xf32>
    %27 = arith.mulf %23, %26 : vector<1x6xf32>
    %c0_13 = arith.constant 0 : index
    %c0_14 = arith.constant 0 : index
    %28 = vector.load %arg4[%c0_13, %c0_14] : memref<1x6xf32, #tpu.memory_space<vmem>>, vector<1x6xf32>
    %29 = arith.mulf %17, %27 : vector<1x6xf32>
    %30 = arith.subf %28, %29 : vector<1x6xf32>
    %31 = tpu.concatenate %27, %30 in 0 : vector<1x6xf32>, vector<1x6xf32> -> vector<2x6xf32>
    %c0_15 = arith.constant 0 : index
    %c0_16 = arith.constant 0 : index
    %32 = vector.load %arg8[%c0_15, %c0_16] : memref<6x128xf32, #tpu.memory_space<vmem>>, vector<6x128xf32>
    %cst_17 = arith.constant dense<0.000000e+00> : vector<2x128xf32>
    %33 = tpu.matmul %31, %32, %cst_17 {dimension_numbers = #tpu.dot_dimension_numbers<[1], [0], [0], [1], [0, 0, 1, 1], [], []>} : vector<2x6xf32>, vector<6x128xf32>, vector<2x128xf32> -> vector<2x128xf32>
    %34 = vector.extract_strided_slice %33 {offsets = [0, 0], sizes = [1, 128], strides = [1, 1]} : vector<2x128xf32> to vector<1x128xf32>
    %35 = vector.broadcast %34 : vector<1x128xf32> to vector<32x128xf32>
    %36 = arith.mulf %6, %35 : vector<32x128xf32>
    %37 = vector.extract_strided_slice %33 {offsets = [1, 0], sizes = [1, 128], strides = [1, 1]} : vector<2x128xf32> to vector<1x128xf32>
    %38 = vector.broadcast %37 : vector<1x128xf32> to vector<32x128xf32>
    %39 = arith.addf %36, %38 : vector<32x128xf32>
    %cst_18 = arith.constant 0.000000e+00 : f32
    %40 = vector.broadcast %cst_18 : f32 to vector<32x128xf32>
    %41 = arith.maximumf %39, %40 : vector<32x128xf32>
    %cst_19 = arith.constant 0.000000e+00 : f32
    %42 = vector.broadcast %cst_19 : f32 to vector<2x128xf32>
    %43 = vector.extract_strided_slice %41 {offsets = [0, 0], sizes = [30, 128], strides = [1, 1]} : vector<32x128xf32> to vector<30x128xf32>
    %44 = tpu.concatenate %42, %43 in 0 : vector<2x128xf32>, vector<30x128xf32> -> vector<32x128xf32>
    %45 = vector.extract_strided_slice %41 {offsets = [2, 0], sizes = [30, 128], strides = [1, 1]} : vector<32x128xf32> to vector<30x128xf32>
    %46 = tpu.concatenate %45, %42 in 0 : vector<30x128xf32>, vector<2x128xf32> -> vector<32x128xf32>
    %47 = tpu.concatenate %44, %41, %46 in 1 : vector<32x128xf32>, vector<32x128xf32>, vector<32x128xf32> -> vector<32x384xf32>
    %c0_20 = arith.constant 0 : index
    %c0_21 = arith.constant 0 : index
    %48 = vector.load %arg2[%c0_20, %c0_21] : memref<384x128xf32, #tpu.memory_space<vmem>>, vector<384x128xf32>
    %cst_22 = arith.constant dense<0.000000e+00> : vector<32x128xf32>
    %49 = tpu.matmul %47, %48, %cst_22 {dimension_numbers = #tpu.dot_dimension_numbers<[1], [0], [0], [1], [0, 0, 1, 1], [], []>} : vector<32x384xf32>, vector<384x128xf32>, vector<32x128xf32> -> vector<32x128xf32>
    %cst_23 = arith.constant dense<0.000000e+00> : vector<128xf32>
    %50 = vector.multi_reduction <add>, %49, %cst_23 [0] : vector<32x128xf32> to vector<128xf32>
    %51 = vector.shape_cast %50 : vector<128xf32> to vector<1x128xf32>
    %52 = arith.mulf %49, %49 : vector<32x128xf32>
    %cst_24 = arith.constant dense<0.000000e+00> : vector<128xf32>
    %53 = vector.multi_reduction <add>, %52, %cst_24 [0] : vector<32x128xf32> to vector<128xf32>
    %54 = vector.shape_cast %53 : vector<128xf32> to vector<1x128xf32>
    %55 = tpu.concatenate %51, %54 in 0 : vector<1x128xf32>, vector<1x128xf32> -> vector<2x128xf32>
    %c0_25 = arith.constant 0 : index
    %c0_26 = arith.constant 0 : index
    %56 = vector.load %arg9[%c0_25, %c0_26] : memref<128x8xf32, #tpu.memory_space<vmem>>, vector<128x8xf32>
    %cst_27 = arith.constant dense<0.000000e+00> : vector<2x8xf32>
    %57 = tpu.matmul %55, %56, %cst_27 {dimension_numbers = #tpu.dot_dimension_numbers<[1], [0], [0], [1], [0, 0, 1, 1], [], []>} : vector<2x128xf32>, vector<128x8xf32>, vector<2x8xf32> -> vector<2x8xf32>
    %cst_28 = arith.constant 0.001953125 : f32
    %58 = vector.broadcast %cst_28 : f32 to vector<2x8xf32>
    %59 = arith.mulf %57, %58 : vector<2x8xf32>
    %60 = vector.extract_strided_slice %59 {offsets = [0, 0], sizes = [1, 8], strides = [1, 1]} : vector<2x8xf32> to vector<1x8xf32>
    %61 = vector.extract_strided_slice %59 {offsets = [1, 0], sizes = [1, 8], strides = [1, 1]} : vector<2x8xf32> to vector<1x8xf32>
    %62 = arith.mulf %60, %60 : vector<1x8xf32>
    %63 = arith.subf %61, %62 : vector<1x8xf32>
    %cst_29 = arith.constant 0.000000e+00 : f32
    %64 = vector.broadcast %cst_29 : f32 to vector<1x8xf32>
    %65 = arith.maximumf %63, %64 : vector<1x8xf32>
    %c0_30 = arith.constant 0 : index
    %c0_31 = arith.constant 0 : index
    %66 = vector.load %arg5[%c0_30, %c0_31] : memref<1x8xf32, #tpu.memory_space<vmem>>, vector<1x8xf32>
    %cst_32 = arith.constant 9.99999974E-6 : f32
    %67 = vector.broadcast %cst_32 : f32 to vector<1x8xf32>
    %68 = arith.addf %65, %67 : vector<1x8xf32>
    %69 = math.rsqrt %68 : vector<1x8xf32>
    %70 = arith.mulf %66, %69 : vector<1x8xf32>
    %c0_33 = arith.constant 0 : index
    %c0_34 = arith.constant 0 : index
    %71 = vector.load %arg6[%c0_33, %c0_34] : memref<1x8xf32, #tpu.memory_space<vmem>>, vector<1x8xf32>
    %72 = arith.mulf %60, %70 : vector<1x8xf32>
    %73 = arith.subf %71, %72 : vector<1x8xf32>
    %74 = tpu.concatenate %70, %73 in 0 : vector<1x8xf32>, vector<1x8xf32> -> vector<2x8xf32>
    %c0_35 = arith.constant 0 : index
    %c0_36 = arith.constant 0 : index
    %75 = vector.load %arg10[%c0_35, %c0_36] : memref<8x128xf32, #tpu.memory_space<vmem>>, vector<8x128xf32>
    %cst_37 = arith.constant dense<0.000000e+00> : vector<2x128xf32>
    %76 = tpu.matmul %74, %75, %cst_37 {dimension_numbers = #tpu.dot_dimension_numbers<[1], [0], [0], [1], [0, 0, 1, 1], [], []>} : vector<2x8xf32>, vector<8x128xf32>, vector<2x128xf32> -> vector<2x128xf32>
    %77 = vector.extract_strided_slice %76 {offsets = [0, 0], sizes = [1, 128], strides = [1, 1]} : vector<2x128xf32> to vector<1x128xf32>
    %78 = vector.broadcast %77 : vector<1x128xf32> to vector<32x128xf32>
    %79 = arith.mulf %49, %78 : vector<32x128xf32>
    %80 = vector.extract_strided_slice %76 {offsets = [1, 0], sizes = [1, 128], strides = [1, 1]} : vector<2x128xf32> to vector<1x128xf32>
    %81 = vector.broadcast %80 : vector<1x128xf32> to vector<32x128xf32>
    %82 = arith.addf %79, %81 : vector<32x128xf32>
    %cst_38 = arith.constant 0.000000e+00 : f32
    %83 = vector.broadcast %cst_38 : f32 to vector<32x128xf32>
    %84 = arith.maximumf %82, %83 : vector<32x128xf32>
    %c0_39 = arith.constant 0 : index
    %c0_40 = arith.constant 0 : index
    %85 = vector.load %arg11[%c0_39, %c0_40] : memref<32x128xf32, #tpu.memory_space<vmem>>, vector<32x128xf32>
    tpu.vector_store %arg11[%c0_39, %c0_40], %84 {strides = array<i32>} : memref<32x128xf32, #tpu.memory_space<vmem>>, vector<32x128xf32>,
    return
  }
}

</mosaic_0001>

<llo_original>
// kernel: double_conv.1
$region0: #{double_conv.1}
  #allocation0 [shape = 'u32[]', space=smem, size = 0x4, offset = 0x4, fixed_abs, tag = 'smem constant byte address 0x4 - core index']
  #allocation1 [shape = 'u32[144,128]{1,0:T(1,128)}', space=vmem, size = 0x12000, scoped, tag = 'internal scratch']
  %s0 = inlined_call_operand.vmem [shape: f32[36,64], index: 0, kind: input, shape index: {}]
  %s1 = inlined_call_operand.vmem [shape: f32[192,128], index: 1, kind: input, shape index: {}]
  %s2 = inlined_call_operand.vmem [shape: f32[384,128], index: 2, kind: input, shape index: {}]
  %s3 = inlined_call_operand.vmem [shape: f32[1,6], index: 3, kind: input, shape index: {}]
  %s4 = inlined_call_operand.vmem [shape: f32[1,6], index: 4, kind: input, shape index: {}]
  %s5 = inlined_call_operand.vmem [shape: f32[1,8], index: 5, kind: input, shape index: {}]
  %s6 = inlined_call_operand.vmem [shape: f32[1,8], index: 6, kind: input, shape index: {}]
  %s7 = inlined_call_operand.vmem [shape: f32[128,6], index: 7, kind: input, shape index: {}]
  %s8 = inlined_call_operand.vmem [shape: f32[6,128], index: 8, kind: input, shape index: {}]
  %s9 = inlined_call_operand.vmem [shape: f32[128,8], index: 9, kind: input, shape index: {}]
  %s10 = inlined_call_operand.vmem [shape: f32[8,128], index: 10, kind: input, shape index: {}]
  %s11 = inlined_call_operand.vmem [shape: f32[32,128], index: 11, kind: output, shape index: {}]
  %s12 = sld [smem:[#allocation0]]
  $region54: #{double_conv.1} parent=0
    _
  %s14 = ssub.s32 1, %s12
  %s15 = scalar_select 0, %s14, %s12
  // Predicated region
  $region2: #{double_conv.1} parent=0 // pred_check
    _
  $region3: #{double_conv.1} parent=0 // pred_check_branch
    %17 = sbr.rel (0) target = $region5
  $region4: #{double_conv.1} parent=0 // pred_region
    _
  $region5: #{double_conv.1} parent=0 // pred_fallthru
    _
  // Predicated region
  $region6: #{double_conv.1} parent=0 // pred_check
    _
  $region7: #{double_conv.1} parent=0 // pred_check_branch
    %19 = sbr.rel (0) target = $region9
  $region8: #{double_conv.1} parent=0 // pred_region
    _
  $region9: #{double_conv.1} parent=0 // pred_fallthru
    _
  // Predicated region
  $region10: #{double_conv.1} parent=0 // pred_check
    _
  $region11: #{double_conv.1} parent=0 // pred_check_branch
    %21 = sbr.rel (0) target = $region13
  $region12: #{double_conv.1} parent=0 // pred_region
    _
  $region13: #{double_conv.1} parent=0 // pred_fallthru
    _
  // Predicated region
  $region14: #{double_conv.1} parent=0 // pred_check
    _
  $region15: #{double_conv.1} parent=0 // pred_check_branch
    %23 = sbr.rel (0) target = $region17
  $region16: #{double_conv.1} parent=0 // pred_region
    _
  $region17: #{double_conv.1} parent=0 // pred_fallthru
    _
  // Predicated region
  $region18: #{double_conv.1} parent=0 // pred_check
    _
  $region19: #{double_conv.1} parent=0 // pred_check_branch
    %25 = sbr.rel (0) target = $region21
  $region20: #{double_conv.1} parent=0 // pred_region
    _
  $region21: #{double_conv.1} parent=0 // pred_fallthru
    _
  // Predicated region
  $region22: #{double_conv.1} parent=0 // pred_check
    _
  $region23: #{double_conv.1} parent=0 // pred_check_branch
    %27 = sbr.rel (0) target = $region25
  $region24: #{double_conv.1} parent=0 // pred_region
    _
  $region25: #{double_conv.1} parent=0 // pred_fallthru
    _
  // Predicated region
  $region26: #{double_conv.1} parent=0 // pred_check
    _
  $region27: #{double_conv.1} parent=0 // pred_check_branch
    %29 = sbr.rel (0) target = $region29
  $region28: #{double_conv.1} parent=0 // pred_region
    _
  $region29: #{double_conv.1} parent=0 // pred_fallthru
    _
  // Predicated region
  $region30: #{double_conv.1} parent=0 // pred_check
    _
  $region31: #{double_conv.1} parent=0 // pred_check_branch
    %31 = sbr.rel (0) target = $region33
  $region32: #{double_conv.1} parent=0 // pred_region
    _
  $region33: #{double_conv.1} parent=0 // pred_fallthru
    _
  // Predicated region
  $region34: #{double_conv.1} parent=0 // pred_check
    _
  $region35: #{double_conv.1} parent=0 // pred_check_branch
    %33 = sbr.rel (0) target = $region37
  $region36: #{double_conv.1} parent=0 // pred_region
    _
  $region37: #{double_conv.1} parent=0 // pred_fallthru
    _
  // Predicated region
  $region38: #{double_conv.1} parent=0 // pred_check
    _
  $region39: #{double_conv.1} parent=0 // pred_check_branch
    %35 = sbr.rel (0) target = $region41
  $region40: #{double_conv.1} parent=0 // pred_region
    _
  $region41: #{double_conv.1} parent=0 // pred_fallthru
    _
  // Predicated region
  $region42: #{double_conv.1} parent=0 // pred_check
    _
  $region43: #{double_conv.1} parent=0 // pred_check_branch
    %37 = sbr.rel (0) target = $region45
  $region44: #{double_conv.1} parent=0 // pred_region
    _
  $region45: #{double_conv.1} parent=0 // pred_fallthru
    _
  %v38 = vld [vmem:[%s0] sm:$0xff]
  %v39 = vld [vmem:[%s0 + $0x8] sm:$0xff]
  %v40 = vld [vmem:[%s0 + $0x10] sm:$0xff]
  %v41 = vld [vmem:[%s0 + $0x18] sm:$0xff]
  %v42 = vld [vmem:[%s0 + $0x20] sm:$0xf]
  %vm48 = vcmask 1045504
  %v49 = vrot.slane %v38, 2
  %v50 = vrot.slane %v39, 2
  %v51 = vsel %vm48, %v49, %v50
  %v52 = vrot.slane %v40, 2
  %v53 = vsel %vm48, %v50, %v52
  %v54 = vrot.slane %v41, 2
  %v55 = vsel %vm48, %v52, %v54
  %v56 = vrot.slane %v42, 2
  %v57 = vsel %vm48, %v54, %v56
  %58 = vrot.lane.b32.xlu0 %v51, 64
  %v59 = vpop.permute.xlu0 %58
  %60 = vrot.lane.b32.xlu0 %v53, 64
  %v61 = vpop.permute.xlu0 %60
  %62 = vrot.lane.b32.xlu0 %v55, 64
  %v63 = vpop.permute.xlu0 %62
  %64 = vrot.lane.b32.xlu0 %v57, 64
  %v65 = vpop.permute.xlu0 %64
  %vm70 = vcmask 1043456
  %v71 = vrot.slane %v38, 4
  %v72 = vrot.slane %v39, 4
  %v73 = vsel %vm70, %v71, %v72
  %v74 = vrot.slane %v40, 4
  %v75 = vsel %vm70, %v72, %v74
  %v76 = vrot.slane %v41, 4
  %v77 = vsel %vm70, %v74, %v76
  %v78 = vrot.slane %v42, 4
  %v79 = vsel %vm70, %v76, %v78
  %vm80 = vcmask 523264
  %v81 = vsel %vm80, %v38, %v59
  %v82 = vsel %vm80, %v39, %v61
  %v83 = vsel %vm80, %v40, %v63
  %v84 = vsel %vm80, %v41, %v65
  %v85 = vld [vmem:[%s1] sm:$0xff]
  %v86 = vld [vmem:[%s1 + $0x8] sm:$0xff]
  %v87 = vld [vmem:[%s1 + $0x10] sm:$0xff]
  %v88 = vld [vmem:[%s1 + $0x18] sm:$0xff]
  %v89 = vld [vmem:[%s1 + $0x20] sm:$0xff]
  %v90 = vld [vmem:[%s1 + $0x28] sm:$0xff]
  %v91 = vld [vmem:[%s1 + $0x30] sm:$0xff]
  %v92 = vld [vmem:[%s1 + $0x38] sm:$0xff]
  %v93 = vld [vmem:[%s1 + $0x40] sm:$0xff]
  %v94 = vld [vmem:[%s1 + $0x48] sm:$0xff]
  %v95 = vld [vmem:[%s1 + $0x50] sm:$0xff]
  %v96 = vld [vmem:[%s1 + $0x58] sm:$0xff]
  %v97 = vld [vmem:[%s1 + $0x60] sm:$0xff]
  %v98 = vld [vmem:[%s1 + $0x68] sm:$0xff]
  %v99 = vld [vmem:[%s1 + $0x70] sm:$0xff]
  %v100 = vld [vmem:[%s1 + $0x78] sm:$0xff]
  %v101 = vld [vmem:[%s1 + $0x80] sm:$0xff]
  %v102 = vld [vmem:[%s1 + $0x88] sm:$0xff]
  %v103 = vld [vmem:[%s1 + $0x90] sm:$0xff]
  %v104 = vld [vmem:[%s1 + $0x98] sm:$0xff]
  %v105 = vld [vmem:[%s1 + $0xa0] sm:$0xff]
  %v106 = vld [vmem:[%s1 + $0xa8] sm:$0xff]
  %v107 = vld [vmem:[%s1 + $0xb0] sm:$0xff]
  %v108 = vld [vmem:[%s1 + $0xb8] sm:$0xff]
  %v109 = vsel %vm80, %v73, 0
  %v111 = vsel %vm80, %v75, 0
  %v113 = vsel %vm80, %v77, 0
  %v115 = vsel %vm80, %v79, 0
  %117 = vmatprep.subr.mxu0 0.0
  %118 = vmatpush1.msra.mxu0 %v85
  %119 = vmatprep.subr.mxu0 0.0
  %120 = vmatpush1.msra.mxu0 %v86
  %121 = vmatprep.subr.mxu0 0.0
  %122 = vmatpush1.msra.mxu0 %v87
  %123 = vmatprep.subr.mxu0 0.0
  %124 = vmatpush1.msra.mxu0 %v88
  %125 = vmatprep.subr.mxu0 0.0
  %126 = vmatpush1.msra.mxu0 %v89
  %127 = vmatprep.subr.mxu0 0.0
  %128 = vmatpush1.msra.mxu0 %v90
  %129 = vmatprep.subr.mxu0 0.0
  %130 = vmatpush1.msra.mxu0 %v91
  %131 = vmatprep.subr.mxu0 0.0
  %132 = vmatpush1.msra.mxu0 %v92
  %133 = vmatprep.subr.mxu0 0.0
  %134 = vmatpush1.msra.mxu0 %v93
  %135 = vmatprep.subr.mxu0 0.0
  %136 = vmatpush1.msra.mxu0 %v94
  %137 = vmatprep.subr.mxu0 0.0
  %138 = vmatpush1.msra.mxu0 %v95
  %139 = vmatprep.subr.mxu0 0.0
  %140 = vmatpush1.msra.mxu0 %v96
  %141 = vmatprep.subr.mxu0 0.0
  %142 = vmatpush1.msra.mxu0 %v97
  %143 = vmatprep.subr.mxu0 0.0
  %144 = vmatpush1.msra.mxu0 %v98
  %145 = vmatprep.subr.mxu0 0.0
  %146 = vmatpush1.msra.mxu0 %v99
  %147 = vmatprep.subr.mxu0 0.0
  %148 = vmatpush1.msra.mxu0 %v100
  %149 = vmatprep.subr.mxu0 0.0
  %150 = vmatpush1.msra.mxu0 %v101
  %151 = vmatprep.subr.mxu0 0.0
  %152 = vmatpush1.msra.mxu0 %v102
  %153 = vmatprep.subr.mxu0 0.0
  %154 = vmatpush1.msra.mxu0 %v103
  %155 = vmatprep.subr.mxu0 0.0
  %156 = vmatpush1.msra.mxu0 %v104
  %157 = vmatprep.subr.mxu0 0.0
  %158 = vmatpush1.msra.mxu0 %v105
  %159 = vmatprep.subr.mxu0 0.0
  %160 = vmatpush1.msra.mxu0 %v106
  %161 = vmatprep.subr.mxu0 0.0
  %162 = vmatpush1.msra.mxu0 %v107
  %163 = vmatprep.subr.mxu0 0.0
  %164 = vmatpush1.msra.mxu0 %v108
  %165 = vmatprep.subr.mxu0 0.0
  %166 = vmatpush1.msra.mxu0 0.0
  %167 = vmatprep.subr.mxu0 0.0
  %168 = vmatpush1.msra.mxu0 0.0
  %169 = vmatprep.subr.mxu0 0.0
  %170 = vmatpush1.msra.mxu0 0.0
  %171 = vmatprep.subr.mxu0 0.0
  %172 = vmatpush1.msra.mxu0 0.0
  %173 = vmatprep.subr.mxu0 0.0
  %174 = vmatpush1.msra.mxu0 0.0
  %175 = vmatprep.subr.mxu0 0.0
  %176 = vmatpush1.msra.mxu0 0.0
  %177 = vmatprep.subr.mxu0 0.0
  %178 = vmatpush1.msra.mxu0 0.0
  %179 = vmatprep.subr.mxu0 0.0
  %180 = vmatpush1.msra.mxu0 0.0
  %181 = vmatprep.mubr.f32.mxu0 %v109
  %182 = vmatmul.mubr.f32.gmra.mrb[0].mxu0 %v81
  %v183 = vpop.f32.mrb[0].mxu0
  %v184 = vadd.f32 0.0, %v183
  %v185 = vpop.f32.mrb[0].mxu0
  %186 = vmatprep.mubr.f32.mxu0 %v111
  %187 = vmatmul.mubr.f32.gmra.mrb[0].mxu0 %v82
  %v188 = vpop.f32.mrb[0].mxu0
  %v189 = vadd.f32 0.0, %v188
  %v190 = vpop.f32.mrb[0].mxu0
  %191 = vmatprep.mubr.f32.mxu0 %v113
  %192 = vmatmul.mubr.f32.gmra.mrb[0].mxu0 %v83
  %v193 = vpop.f32.mrb[0].mxu0
  %v194 = vadd.f32 0.0, %v193
  %v195 = vpop.f32.mrb[0].mxu0
  %196 = vmatprep.mubr.f32.mxu0 %v115
  %197 = vmatmul.mubr.f32.gmra.mrb[0].mxu0 %v84
  %v198 = vpop.f32.mrb[0].mxu0
  %v199 = vadd.f32 0.0, %v198
  %v200 = vpop.f32.mrb[0].mxu0
  %201 = vdwg.mxu0
  %v202 = vadd.f32 %v184, %v189
  %v203 = vadd.f32 %v202, %v194
  %v204 = vadd.f32 %v203, %v199
  %v205 = vrot.slane %v204, 4
  %v206 = vadd.f32 %v204, %v205
  %v207 = vrot.slane %v206, 2
  %v208 = vadd.f32 %v206, %v207
  %v209 = vrot.slane %v208, 1
  %v210 = vadd.f32 %v208, %v209
  %v211 = vmul.f32 %v184, %v184
  %v212 = vmul.f32 %v189, %v189
  %v213 = vmul.f32 %v194, %v194
  %v214 = vmul.f32 %v199, %v199
  %v215 = vadd.f32 %v211, %v212
  %v216 = vadd.f32 %v215, %v213
  %v217 = vadd.f32 %v216, %v214
  %v218 = vrot.slane %v217, 4
  %v219 = vadd.f32 %v217, %v218
  %v220 = vrot.slane %v219, 2
  %v221 = vadd.f32 %v219, %v220
  %v222 = vrot.slane %v221, 1
  %v223 = vadd.f32 %v221, %v222
  %vm224 = vcmask 1040384
  %v225 = vsel %vm224, %v210, %v223
  %v226 = vld [vmem:[%s7] sm:$0xff]
  %v227 = vld [vmem:[%s7 + $0x8] sm:$0xff]
  %v228 = vld [vmem:[%s7 + $0x10] sm:$0xff]
  %v229 = vld [vmem:[%s7 + $0x18] sm:$0xff]
  %v230 = vld [vmem:[%s7 + $0x20] sm:$0xff]
  %v231 = vld [vmem:[%s7 + $0x28] sm:$0xff]
  %v232 = vld [vmem:[%s7 + $0x30] sm:$0xff]
  %v233 = vld [vmem:[%s7 + $0x38] sm:$0xff]
  %v234 = vld [vmem:[%s7 + $0x40] sm:$0xff]
  %v235 = vld [vmem:[%s7 + $0x48] sm:$0xff]
  %v236 = vld [vmem:[%s7 + $0x50] sm:$0xff]
  %v237 = vld [vmem:[%s7 + $0x58] sm:$0xff]
  %v238 = vld [vmem:[%s7 + $0x60] sm:$0xff]
  %v239 = vld [vmem:[%s7 + $0x68] sm:$0xff]
  %v240 = vld [vmem:[%s7 + $0x70] sm:$0xff]
  %v241 = vld [vmem:[%s7 + $0x78] sm:$0xff]
  %242 = vmatprep.subr.mxu0 0.0
  %243 = vmatpush1.msra.mxu0 %v226
  %244 = vmatprep.subr.mxu0 0.0
  %245 = vmatpush1.msra.mxu0 %v227
  %246 = vmatprep.subr.mxu0 0.0
  %247 = vmatpush1.msra.mxu0 %v228
  %248 = vmatprep.subr.mxu0 0.0
  %249 = vmatpush1.msra.mxu0 %v229
  %250 = vmatprep.subr.mxu0 0.0
  %251 = vmatpush1.msra.mxu0 %v230
  %252 = vmatprep.subr.mxu0 0.0
  %253 = vmatpush1.msra.mxu0 %v231
  %254 = vmatprep.subr.mxu0 0.0
  %255 = vmatpush1.msra.mxu0 %v232
  %256 = vmatprep.subr.mxu0 0.0
  %257 = vmatpush1.msra.mxu0 %v233
  %258 = vmatprep.subr.mxu0 0.0
  %259 = vmatpush1.msra.mxu0 %v234
  %260 = vmatprep.subr.mxu0 0.0
  %261 = vmatpush1.msra.mxu0 %v235
  %262 = vmatprep.subr.mxu0 0.0
  %263 = vmatpush1.msra.mxu0 %v236
  %264 = vmatprep.subr.mxu0 0.0
  %265 = vmatpush1.msra.mxu0 %v237
  %266 = vmatprep.subr.mxu0 0.0
  %267 = vmatpush1.msra.mxu0 %v238
  %268 = vmatprep.subr.mxu0 0.0
  %269 = vmatpush1.msra.mxu0 %v239
  %270 = vmatprep.subr.mxu0 0.0
  %271 = vmatpush1.msra.mxu0 %v240
  %272 = vmatprep.subr.mxu0 0.0
  %273 = vmatpush1.msra.mxu0 %v241
  %274 = vmatprep.subr.mxu0 0.0
  %275 = vmatpush1.msra.mxu0 0.0
  %276 = vmatprep.subr.mxu0 0.0
  %277 = vmatpush1.msra.mxu0 0.0
  %278 = vmatprep.subr.mxu0 0.0
  %279 = vmatpush1.msra.mxu0 0.0
  %280 = vmatprep.subr.mxu0 0.0
  %281 = vmatpush1.msra.mxu0 0.0
  %282 = vmatprep.subr.mxu0 0.0
  %283 = vmatpush1.msra.mxu0 0.0
  %284 = vmatprep.subr.mxu0 0.0
  %285 = vmatpush1.msra.mxu0 0.0
  %286 = vmatprep.subr.mxu0 0.0
  %287 = vmatpush1.msra.mxu0 0.0
  %288 = vmatprep.subr.mxu0 0.0
  %289 = vmatpush1.msra.mxu0 0.0
  %290 = vmatprep.subr.mxu0 0.0
  %291 = vmatpush1.msra.mxu0 0.0
  %292 = vmatprep.subr.mxu0 0.0
  %293 = vmatpush1.msra.mxu0 0.0
  %294 = vmatprep.subr.mxu0 0.0
  %295 = vmatpush1.msra.mxu0 0.0
  %296 = vmatprep.subr.mxu0 0.0
  %297 = vmatpush1.msra.mxu0 0.0
  %298 = vmatprep.subr.mxu0 0.0
  %299 = vmatpush1.msra.mxu0 0.0
  %300 = vmatprep.subr.mxu0 0.0
  %301 = vmatpush1.msra.mxu0 0.0
  %302 = vmatprep.subr.mxu0 0.0
  %303 = vmatpush1.msra.mxu0 0.0
  %304 = vmatprep.subr.mxu0 0.0
  %305 = vmatpush1.msra.mxu0 0.0
  %306 = vmatprep.mubr.f32.mxu0 0.0
  %307 = vmatmul.mubr.f32.gmra.mrb[0].mxu0 %v225
  %v308 = vpop.f32.mrb[0].mxu0
  %v309 = vadd.f32 0.0, %v308
  %v310 = vpop.f32.mrb[0].mxu0
  %311 = vdwg.mxu0
  %v312 = vmul.f32 %v309, 0.001953125
  %v313 = vmul.f32 %v312, %v312
  %v315 = vrot.slane %v313, 7
  %v317 = vsub.f32 %v312, %v315
  %v318 = vmax.f32 %v317, 0.0
  %v319 = vld [vmem:[%s3] sm:$0x1]
  %v320 = vadd.f32 %v318, 1e-05
  %v321 = vrsqrt.pop %v320
  %v324 = vunpack.c.l.s4 1966171168
  %v325 = vunpack.c.0.s8 %v324
  %v326 = vlaneseq
  %v327 = vshrl.u32 %v326, 7
  %v328 = vsub.s32 %v325, %v327
  %v329 = vrot.slane %v321, %v328
  %v330 = vcombine.high %v329, %v329
  %v332 = vunpack.c.l.s4 1966171168
  %v333 = vunpack.c.0.s8 %v332
  %v334 = vlaneseq
  %v335 = vshrl.u32 %v334, 7
  %v336 = vsub.s32 %v333, %v335
  %v337 = vrot.slane %v330, %v336
  %v339 = vmul.f32 %v319, %v337
  %v340 = vld [vmem:[%s4] sm:$0x1]
  %v341 = vmul.f32 %v312, %v339
  %v342 = vsub.f32 %v340, %v341
  %v344 = vlaneseq
  %v345 = vshrl.u32 %v344, 7
  %v346 = vsub.s32 0, %v345
  %v347 = vrot.slane %v342, %v346
  %v349 = vsel %vm224, %v339, %v347
  %v350 = vld [vmem:[%s8] sm:$0x3f]
  %vm351 = vcmask 48128
  %v353 = vsel %vm351, %v349, 0
  %v356 = vsel %vm48, %v350, 0
  %358 = vmatprep.subr.mxu0 0.0
  %359 = vmatpush1.msra.mxu0 %v356
  %360 = vmatprep.subr.mxu0 0.0
  %361 = vmatpush1.msra.mxu0 0.0
  %362 = vmatprep.subr.mxu0 0.0
  %363 = vmatpush1.msra.mxu0 0.0
  %364 = vmatprep.subr.mxu0 0.0
  %365 = vmatpush1.msra.mxu0 0.0
  %366 = vmatprep.subr.mxu0 0.0
  %367 = vmatpush1.msra.mxu0 0.0
  %368 = vmatprep.subr.mxu0 0.0
  %369 = vmatpush1.msra.mxu0 0.0
  %370 = vmatprep.subr.mxu0 0.0
  %371 = vmatpush1.msra.mxu0 0.0
  %372 = vmatprep.subr.mxu0 0.0
  %373 = vmatpush1.msra.mxu0 0.0
  %374 = vmatprep.subr.mxu0 0.0
  %375 = vmatpush1.msra.mxu0 0.0
  %376 = vmatprep.subr.mxu0 0.0
  %377 = vmatpush1.msra.mxu0 0.0
  %378 = vmatprep.subr.mxu0 0.0
  %379 = vmatpush1.msra.mxu0 0.0
  %380 = vmatprep.subr.mxu0 0.0
  %381 = vmatpush1.msra.mxu0 0.0
  %382 = vmatprep.subr.mxu0 0.0
  %383 = vmatpush1.msra.mxu0 0.0
  %384 = vmatprep.subr.mxu0 0.0
  %385 = vmatpush1.msra.mxu0 0.0
  %386 = vmatprep.subr.mxu0 0.0
  %387 = vmatpush1.msra.mxu0 0.0
  %388 = vmatprep.subr.mxu0 0.0
  %389 = vmatpush1.msra.mxu0 0.0
  %390 = vmatprep.subr.mxu0 0.0
  %391 = vmatpush1.msra.mxu0 0.0
  %392 = vmatprep.subr.mxu0 0.0
  %393 = vmatpush1.msra.mxu0 0.0
  %394 = vmatprep.subr.mxu0 0.0
  %395 = vmatpush1.msra.mxu0 0.0
  %396 = vmatprep.subr.mxu0 0.0
  %397 = vmatpush1.msra.mxu0 0.0
  %398 = vmatprep.subr.mxu0 0.0
  %399 = vmatpush1.msra.mxu0 0.0
  %400 = vmatprep.subr.mxu0 0.0
  %401 = vmatpush1.msra.mxu0 0.0
  %402 = vmatprep.subr.mxu0 0.0
  %403 = vmatpush1.msra.mxu0 0.0
  %404 = vmatprep.subr.mxu0 0.0
  %405 = vmatpush1.msra.mxu0 0.0
  %406 = vmatprep.subr.mxu0 0.0
  %407 = vmatpush1.msra.mxu0 0.0
  %408 = vmatprep.subr.mxu0 0.0
  %409 = vmatpush1.msra.mxu0 0.0
  %410 = vmatprep.subr.mxu0 0.0
  %411 = vmatpush1.msra.mxu0 0.0
  %412 = vmatprep.subr.mxu0 0.0
  %413 = vmatpush1.msra.mxu0 0.0
  %414 = vmatprep.subr.mxu0 0.0
  %415 = vmatpush1.msra.mxu0 0.0
  %416 = vmatprep.subr.mxu0 0.0
  %417 = vmatpush1.msra.mxu0 0.0
  %418 = vmatprep.subr.mxu0 0.0
  %419 = vmatpush1.msra.mxu0 0.0
  %420 = vmatprep.subr.mxu0 0.0
  %421 = vmatpush1.msra.mxu0 0.0
  %422 = vmatprep.mubr.f32.mxu0 0.0
  %423 = vmatmul.mubr.f32.gmra.mrb[0].mxu0 %v353
  %v424 = vpop.f32.mrb[0].mxu0
  %v425 = vadd.f32 0.0, %v424
  %v426 = vpop.f32.mrb[0].mxu0
  %427 = vdwg.mxu0
  %v428 = vlaneseq
  %v429 = vshrl.u32 %v428, 7
  %v430 = vsub.s32 0, %v429
  %v431 = vrot.slane %v425, %v430
  %v432 = vmul.f32 %v184, %v431
  %v433 = vmul.f32 %v189, %v431
  %v434 = vmul.f32 %v194, %v431
  %v435 = vmul.f32 %v199, %v431
  %v436 = vlaneseq
  %v437 = vshrl.u32 %v436, 7
  %v438 = vsub.s32 1, %v437
  %v439 = vrot.slane %v425, %v438
  %v440 = vadd.f32 %v432, %v439
  %v441 = vadd.f32 %v433, %v439
  %v442 = vadd.f32 %v434, %v439
  %v443 = vadd.f32 %v435, %v439
  %v444 = vmax.f32 %v440, 0.0
  %v445 = vmax.f32 %v441, 0.0
  %v446 = vmax.f32 %v442, 0.0
  %v447 = vmax.f32 %v443, 0.0
  %vm452 = vcmask 1041408
  %v453 = vrot.slane %v444, 6
  %v454 = vrot.slane %v445, 6
  %v455 = vsel %vm452, %v453, %v454
  %v456 = vrot.slane %v446, 6
  %v457 = vsel %vm452, %v454, %v456
  %v458 = vrot.slane %v447, 6
  %v459 = vsel %vm452, %v456, %v458
  %v464 = vsel %vm452, 0.0, %v453
  %v465 = vrot.slane %v444, 2
  %v466 = vrot.slane %v445, 2
  %v467 = vsel %vm48, %v465, %v466
  %v468 = vrot.slane %v446, 2
  %v469 = vsel %vm48, %v466, %v468
  %v470 = vrot.slane %v447, 2
  %v471 = vsel %vm48, %v468, %v470
  %v476 = vsel %vm48, %v470, 0.0
  %v477 = vld [vmem:[%s2] sm:$0xff]
  %v478 = vld [vmem:[%s2 + $0x8] sm:$0xff]
  %v479 = vld [vmem:[%s2 + $0x10] sm:$0xff]
  %v480 = vld [vmem:[%s2 + $0x18] sm:$0xff]
  %v481 = vld [vmem:[%s2 + $0x20] sm:$0xff]
  %v482 = vld [vmem:[%s2 + $0x28] sm:$0xff]
  %v483 = vld [vmem:[%s2 + $0x30] sm:$0xff]
  %v484 = vld [vmem:[%s2 + $0x38] sm:$0xff]
  %v485 = vld [vmem:[%s2 + $0x40] sm:$0xff]
  %v486 = vld [vmem:[%s2 + $0x48] sm:$0xff]
  %v487 = vld [vmem:[%s2 + $0x50] sm:$0xff]
  %v488 = vld [vmem:[%s2 + $0x58] sm:$0xff]
  %v489 = vld [vmem:[%s2 + $0x60] sm:$0xff]
  %v490 = vld [vmem:[%s2 + $0x68] sm:$0xff]
  %v491 = vld [vmem:[%s2 + $0x70] sm:$0xff]
  %v492 = vld [vmem:[%s2 + $0x78] sm:$0xff]
  %v493 = vld [vmem:[%s2 + $0x80] sm:$0xff]
  %v494 = vld [vmem:[%s2 + $0x88] sm:$0xff]
  %v495 = vld [vmem:[%s2 + $0x90] sm:$0xff]
  %v496 = vld [vmem:[%s2 + $0x98] sm:$0xff]
  %v497 = vld [vmem:[%s2 + $0xa0] sm:$0xff]
  %v498 = vld [vmem:[%s2 + $0xa8] sm:$0xff]
  %v499 = vld [vmem:[%s2 + $0xb0] sm:$0xff]
  %v500 = vld [vmem:[%s2 + $0xb8] sm:$0xff]
  %v501 = vld [vmem:[%s2 + $0xc0] sm:$0xff]
  %v502 = vld [vmem:[%s2 + $0xc8] sm:$0xff]
  %v503 = vld [vmem:[%s2 + $0xd0] sm:$0xff]
  %v504 = vld [vmem:[%s2 + $0xd8] sm:$0xff]
  %v505 = vld [vmem:[%s2 + $0xe0] sm:$0xff]
  %v506 = vld [vmem:[%s2 + $0xe8] sm:$0xff]
  %v507 = vld [vmem:[%s2 + $0xf0] sm:$0xff]
  %v508 = vld [vmem:[%s2 + $0xf8] sm:$0xff]
  %v509 = vld [vmem:[%s2 + $0x100] sm:$0xff]
  %v510 = vld [vmem:[%s2 + $0x108] sm:$0xff]
  %v511 = vld [vmem:[%s2 + $0x110] sm:$0xff]
  %v512 = vld [vmem:[%s2 + $0x118] sm:$0xff]
  %v513 = vld [vmem:[%s2 + $0x120] sm:$0xff]
  %v514 = vld [vmem:[%s2 + $0x128] sm:$0xff]
  %v515 = vld [vmem:[%s2 + $0x130] sm:$0xff]
  %v516 = vld [vmem:[%s2 + $0x138] sm:$0xff]
  %v517 = vld [vmem:[%s2 + $0x140] sm:$0xff]
  %v518 = vld [vmem:[%s2 + $0x148] sm:$0xff]
  %v519 = vld [vmem:[%s2 + $0x150] sm:$0xff]
  %v520 = vld [vmem:[%s2 + $0x158] sm:$0xff]
  %v521 = vld [vmem:[%s2 + $0x160] sm:$0xff]
  %v522 = vld [vmem:[%s2 + $0x168] sm:$0xff]
  %v523 = vld [vmem:[%s2 + $0x170] sm:$0xff]
  %v524 = vld [vmem:[%s2 + $0x178] sm:$0xff]
  %525 = vmatprep.subr.mxu0 0.0
  %526 = vmatpush1.msra.mxu0 %v477
  %527 = vmatprep.subr.mxu0 0.0
  %528 = vmatpush1.msra.mxu0 %v478
  %529 = vmatprep.subr.mxu0 0.0
  %530 = vmatpush1.msra.mxu0 %v479
  %531 = vmatprep.subr.mxu0 0.0
  %532 = vmatpush1.msra.mxu0 %v480
  %533 = vmatprep.subr.mxu0 0.0
  %534 = vmatpush1.msra.mxu0 %v481
  %535 = vmatprep.subr.mxu0 0.0
  %536 = vmatpush1.msra.mxu0 %v482
  %537 = vmatprep.subr.mxu0 0.0
  %538 = vmatpush1.msra.mxu0 %v483
  %539 = vmatprep.subr.mxu0 0.0
  %540 = vmatpush1.msra.mxu0 %v484
  %541 = vmatprep.subr.mxu0 0.0
  %542 = vmatpush1.msra.mxu0 %v485
  %543 = vmatprep.subr.mxu0 0.0
  %544 = vmatpush1.msra.mxu0 %v486
  %545 = vmatprep.subr.mxu0 0.0
  %546 = vmatpush1.msra.mxu0 %v487
  %547 = vmatprep.subr.mxu0 0.0
  %548 = vmatpush1.msra.mxu0 %v488
  %549 = vmatprep.subr.mxu0 0.0
  %550 = vmatpush1.msra.mxu0 %v489
  %551 = vmatprep.subr.mxu0 0.0
  %552 = vmatpush1.msra.mxu0 %v490
  %553 = vmatprep.subr.mxu0 0.0
  %554 = vmatpush1.msra.mxu0 %v491
  %555 = vmatprep.subr.mxu0 0.0
  %556 = vmatpush1.msra.mxu0 %v492
  %557 = vmatprep.subr.mxu0 0.0
  %558 = vmatpush1.msra.mxu0 %v493
  %559 = vmatprep.subr.mxu0 0.0
  %560 = vmatpush1.msra.mxu0 %v494
  %561 = vmatprep.subr.mxu0 0.0
  %562 = vmatpush1.msra.mxu0 %v495
  %563 = vmatprep.subr.mxu0 0.0
  %564 = vmatpush1.msra.mxu0 %v496
  %565 = vmatprep.subr.mxu0 0.0
  %566 = vmatpush1.msra.mxu0 %v497
  %567 = vmatprep.subr.mxu0 0.0
  %568 = vmatpush1.msra.mxu0 %v498
  %569 = vmatprep.subr.mxu0 0.0
  %570 = vmatpush1.msra.mxu0 %v499
  %571 = vmatprep.subr.mxu0 0.0
  %572 = vmatpush1.msra.mxu0 %v500
  %573 = vmatprep.subr.mxu0 0.0
  %574 = vmatpush1.msra.mxu0 %v501
  %575 = vmatprep.subr.mxu0 0.0
  %576 = vmatpush1.msra.mxu0 %v502
  %577 = vmatprep.subr.mxu0 0.0
  %578 = vmatpush1.msra.mxu0 %v503
  %579 = vmatprep.subr.mxu0 0.0
  %580 = vmatpush1.msra.mxu0 %v504
  %581 = vmatprep.subr.mxu0 0.0
  %582 = vmatpush1.msra.mxu0 %v505
  %583 = vmatprep.subr.mxu0 0.0
  %584 = vmatpush1.msra.mxu0 %v506
  %585 = vmatprep.subr.mxu0 0.0
  %586 = vmatpush1.msra.mxu0 %v507
  %587 = vmatprep.subr.mxu0 0.0
  %588 = vmatpush1.msra.mxu0 %v508
  %589 = vmatprep.mubr.f32.mxu0 %v444
  %590 = vmatmul.mubr.f32.gmra.mrb[0].mxu0 %v464
  %v591 = vpop.f32.mrb[0].mxu0
  %v592 = vadd.f32 0.0, %v591
  %v593 = vpop.f32.mrb[0].mxu0
  %594 = vmatprep.mubr.f32.mxu0 %v445
  %595 = vmatmul.mubr.f32.gmra.mrb[0].mxu0 %v455
  %v596 = vpop.f32.mrb[0].mxu0
  %v597 = vadd.f32 0.0, %v596
  %v598 = vpop.f32.mrb[0].mxu0
  %599 = vmatprep.mubr.f32.mxu0 %v446
  %600 = vmatmul.mubr.f32.gmra.mrb[0].mxu0 %v457
  %v601 = vpop.f32.mrb[0].mxu0
  %v602 = vadd.f32 0.0, %v601
  %v603 = vpop.f32.mrb[0].mxu0
  %604 = vmatprep.mubr.f32.mxu0 %v447
  %605 = vmatmul.mubr.f32.gmra.mrb[0].mxu0 %v459
  %v606 = vpop.f32.mrb[0].mxu0
  %v607 = vadd.f32 0.0, %v606
  %v608 = vpop.f32.mrb[0].mxu0
  %609 = vdwg.mxu0
  %610 = vmatprep.subr.mxu0 0.0
  %611 = vmatpush1.msra.mxu0 %v509
  %612 = vmatprep.subr.mxu0 0.0
  %613 = vmatpush1.msra.mxu0 %v510
  %614 = vmatprep.subr.mxu0 0.0
  %615 = vmatpush1.msra.mxu0 %v511
  %616 = vmatprep.subr.mxu0 0.0
  %617 = vmatpush1.msra.mxu0 %v512
  %618 = vmatprep.subr.mxu0 0.0
  %619 = vmatpush1.msra.mxu0 %v513
  %620 = vmatprep.subr.mxu0 0.0
  %621 = vmatpush1.msra.mxu0 %v514
  %622 = vmatprep.subr.mxu0 0.0
  %623 = vmatpush1.msra.mxu0 %v515
  %624 = vmatprep.subr.mxu0 0.0
  %625 = vmatpush1.msra.mxu0 %v516
  %626 = vmatprep.subr.mxu0 0.0
  %627 = vmatpush1.msra.mxu0 %v517
  %628 = vmatprep.subr.mxu0 0.0
  %629 = vmatpush1.msra.mxu0 %v518
  %630 = vmatprep.subr.mxu0 0.0
  %631 = vmatpush1.msra.mxu0 %v519
  %632 = vmatprep.subr.mxu0 0.0
  %633 = vmatpush1.msra.mxu0 %v520
  %634 = vmatprep.subr.mxu0 0.0
  %635 = vmatpush1.msra.mxu0 %v521
  %636 = vmatprep.subr.mxu0 0.0
  %637 = vmatpush1.msra.mxu0 %v522
  %638 = vmatprep.subr.mxu0 0.0
  %639 = vmatpush1.msra.mxu0 %v523
  %640 = vmatprep.subr.mxu0 0.0
  %641 = vmatpush1.msra.mxu0 %v524
  %642 = vmatprep.subr.mxu0 0.0
  %643 = vmatpush1.msra.mxu0 0.0
  %644 = vmatprep.subr.mxu0 0.0
  %645 = vmatpush1.msra.mxu0 0.0
  %646 = vmatprep.subr.mxu0 0.0
  %647 = vmatpush1.msra.mxu0 0.0
  %648 = vmatprep.subr.mxu0 0.0
  %649 = vmatpush1.msra.mxu0 0.0
  %650 = vmatprep.subr.mxu0 0.0
  %651 = vmatpush1.msra.mxu0 0.0
  %652 = vmatprep.subr.mxu0 0.0
  %653 = vmatpush1.msra.mxu0 0.0
  %654 = vmatprep.subr.mxu0 0.0
  %655 = vmatpush1.msra.mxu0 0.0
  %656 = vmatprep.subr.mxu0 0.0
  %657 = vmatpush1.msra.mxu0 0.0
  %658 = vmatprep.subr.mxu0 0.0
  %659 = vmatpush1.msra.mxu0 0.0
  %660 = vmatprep.subr.mxu0 0.0
  %661 = vmatpush1.msra.mxu0 0.0
  %662 = vmatprep.subr.mxu0 0.0
  %663 = vmatpush1.msra.mxu0 0.0
  %664 = vmatprep.subr.mxu0 0.0
  %665 = vmatpush1.msra.mxu0 0.0
  %666 = vmatprep.subr.mxu0 0.0
  %667 = vmatpush1.msra.mxu0 0.0
  %668 = vmatprep.subr.mxu0 0.0
  %669 = vmatpush1.msra.mxu0 0.0
  %670 = vmatprep.subr.mxu0 0.0
  %671 = vmatpush1.msra.mxu0 0.0
  %672 = vmatprep.subr.mxu0 0.0
  %673 = vmatpush1.msra.mxu0 0.0
  %674 = vmatprep.mubr.f32.mxu0 0.0
  %675 = vmatmul.mubr.f32.gmra.mrb[0].mxu0 %v467
  %v676 = vpop.f32.mrb[0].mxu0
  %v677 = vadd.f32 %v592, %v676
  %v678 = vpop.f32.mrb[0].mxu0
  %679 = vmatprep.mubr.f32.mxu0 0.0
  %680 = vmatmul.mubr.f32.gmra.mrb[0].mxu0 %v469
  %v681 = vpop.f32.mrb[0].mxu0
  %v682 = vadd.f32 %v597, %v681
  %v683 = vpop.f32.mrb[0].mxu0
  %684 = vmatprep.mubr.f32.mxu0 0.0
  %685 = vmatmul.mubr.f32.gmra.mrb[0].mxu0 %v471
  %v686 = vpop.f32.mrb[0].mxu0
  %v687 = vadd.f32 %v602, %v686
  %v688 = vpop.f32.mrb[0].mxu0
  %689 = vmatprep.mubr.f32.mxu0 0.0
  %690 = vmatmul.mubr.f32.gmra.mrb[0].mxu0 %v476
  %v691 = vpop.f32.mrb[0].mxu0
  %v692 = vadd.f32 %v607, %v691
  %v693 = vpop.f32.mrb[0].mxu0
  %694 = vdwg.mxu0
  %v695 = vadd.f32 %v677, %v682
  %v696 = vadd.f32 %v695, %v687
  %v697 = vadd.f32 %v696, %v692
  %v698 = vrot.slane %v697, 4
  %v699 = vadd.f32 %v697, %v698
  %v700 = vrot.slane %v699, 2
  %v701 = vadd.f32 %v699, %v700
  %v702 = vrot.slane %v701, 1
  %v703 = vadd.f32 %v701, %v702
  %v704 = vmul.f32 %v677, %v677
  %v705 = vmul.f32 %v682, %v682
  %v706 = vmul.f32 %v687, %v687
  %v707 = vmul.f32 %v692, %v692
  %v708 = vadd.f32 %v704, %v705
  %v709 = vadd.f32 %v708, %v706
  %v710 = vadd.f32 %v709, %v707
  %v711 = vrot.slane %v710, 4
  %v712 = vadd.f32 %v710, %v711
  %v713 = vrot.slane %v712, 2
  %v714 = vadd.f32 %v712, %v713
  %v715 = vrot.slane %v714, 1
  %v716 = vadd.f32 %v714, %v715
  %v717 = vsel %vm224, %v703, %v716
  %v718 = vld [vmem:[%s9] sm:$0xff]
  %v719 = vld [vmem:[%s9 + $0x8] sm:$0xff]
  %v720 = vld [vmem:[%s9 + $0x10] sm:$0xff]
  %v721 = vld [vmem:[%s9 + $0x18] sm:$0xff]
  %v722 = vld [vmem:[%s9 + $0x20] sm:$0xff]
  %v723 = vld [vmem:[%s9 + $0x28] sm:$0xff]
  %v724 = vld [vmem:[%s9 + $0x30] sm:$0xff]
  %v725 = vld [vmem:[%s9 + $0x38] sm:$0xff]
  %v726 = vld [vmem:[%s9 + $0x40] sm:$0xff]
  %v727 = vld [vmem:[%s9 + $0x48] sm:$0xff]
  %v728 = vld [vmem:[%s9 + $0x50] sm:$0xff]
  %v729 = vld [vmem:[%s9 + $0x58] sm:$0xff]
  %v730 = vld [vmem:[%s9 + $0x60] sm:$0xff]
  %v731 = vld [vmem:[%s9 + $0x68] sm:$0xff]
  %v732 = vld [vmem:[%s9 + $0x70] sm:$0xff]
  %v733 = vld [vmem:[%s9 + $0x78] sm:$0xff]
  %734 = vmatprep.subr.mxu0 0.0
  %735 = vmatpush1.msra.mxu0 %v718
  %736 = vmatprep.subr.mxu0 0.0
  %737 = vmatpush1.msra.mxu0 %v719
  %738 = vmatprep.subr.mxu0 0.0
  %739 = vmatpush1.msra.mxu0 %v720
  %740 = vmatprep.subr.mxu0 0.0
  %741 = vmatpush1.msra.mxu0 %v721
  %742 = vmatprep.subr.mxu0 0.0
  %743 = vmatpush1.msra.mxu0 %v722
  %744 = vmatprep.subr.mxu0 0.0
  %745 = vmatpush1.msra.mxu0 %v723
  %746 = vmatprep.subr.mxu0 0.0
  %747 = vmatpush1.msra.mxu0 %v724
  %748 = vmatprep.subr.mxu0 0.0
  %749 = vmatpush1.msra.mxu0 %v725
  %750 = vmatprep.subr.mxu0 0.0
  %751 = vmatpush1.msra.mxu0 %v726
  %752 = vmatprep.subr.mxu0 0.0
  %753 = vmatpush1.msra.mxu0 %v727
  %754 = vmatprep.subr.mxu0 0.0
  %755 = vmatpush1.msra.mxu0 %v728
  %756 = vmatprep.subr.mxu0 0.0
  %757 = vmatpush1.msra.mxu0 %v729
  %758 = vmatprep.subr.mxu0 0.0
  %759 = vmatpush1.msra.mxu0 %v730
  %760 = vmatprep.subr.mxu0 0.0
  %761 = vmatpush1.msra.mxu0 %v731
  %762 = vmatprep.subr.mxu0 0.0
  %763 = vmatpush1.msra.mxu0 %v732
  %764 = vmatprep.subr.mxu0 0.0
  %765 = vmatpush1.msra.mxu0 %v733
  %766 = vmatprep.subr.mxu0 0.0
  %767 = vmatpush1.msra.mxu0 0.0
  %768 = vmatprep.subr.mxu0 0.0
  %769 = vmatpush1.msra.mxu0 0.0
  %770 = vmatprep.subr.mxu0 0.0
  %771 = vmatpush1.msra.mxu0 0.0
  %772 = vmatprep.subr.mxu0 0.0
  %773 = vmatpush1.msra.mxu0 0.0
  %774 = vmatprep.subr.mxu0 0.0
  %775 = vmatpush1.msra.mxu0 0.0
  %776 = vmatprep.subr.mxu0 0.0
  %777 = vmatpush1.msra.mxu0 0.0
  %778 = vmatprep.subr.mxu0 0.0
  %779 = vmatpush1.msra.mxu0 0.0
  %780 = vmatprep.subr.mxu0 0.0
  %781 = vmatpush1.msra.mxu0 0.0
  %782 = vmatprep.subr.mxu0 0.0
  %783 = vmatpush1.msra.mxu0 0.0
  %784 = vmatprep.subr.mxu0 0.0
  %785 = vmatpush1.msra.mxu0 0.0
  %786 = vmatprep.subr.mxu0 0.0
  %787 = vmatpush1.msra.mxu0 0.0
  %788 = vmatprep.subr.mxu0 0.0
  %789 = vmatpush1.msra.mxu0 0.0
  %790 = vmatprep.subr.mxu0 0.0
  %791 = vmatpush1.msra.mxu0 0.0
  %792 = vmatprep.subr.mxu0 0.0
  %793 = vmatpush1.msra.mxu0 0.0
  %794 = vmatprep.subr.mxu0 0.0
  %795 = vmatpush1.msra.mxu0 0.0
  %796 = vmatprep.subr.mxu0 0.0
  %797 = vmatpush1.msra.mxu0 0.0
  %798 = vmatprep.mubr.f32.mxu0 0.0
  %799 = vmatmul.mubr.f32.gmra.mrb[0].mxu0 %v717
  %v800 = vpop.f32.mrb[0].mxu0
  %v801 = vadd.f32 0.0, %v800
  %v802 = vpop.f32.mrb[0].mxu0
  %803 = vdwg.mxu0
  %v804 = vmul.f32 %v801, 0.001953125
  %v805 = vmul.f32 %v804, %v804
  %v807 = vrot.slane %v805, 7
  %v809 = vsub.f32 %v804, %v807
  %v810 = vmax.f32 %v809, 0.0
  %v811 = vld [vmem:[%s5] sm:$0x1]
  %v812 = vadd.f32 %v810, 1e-05
  %v813 = vrsqrt.pop %v812
  %v816 = vunpack.c.l.s4 1966171168
  %v817 = vunpack.c.0.s8 %v816
  %v818 = vlaneseq
  %v819 = vshrl.u32 %v818, 7
  %v820 = vsub.s32 %v817, %v819
  %v821 = vrot.slane %v813, %v820
  %v822 = vcombine.high %v821, %v821
  %v824 = vunpack.c.l.s4 1966171168
  %v825 = vunpack.c.0.s8 %v824
  %v826 = vlaneseq
  %v827 = vshrl.u32 %v826, 7
  %v828 = vsub.s32 %v825, %v827
  %v829 = vrot.slane %v822, %v828
  %v831 = vmul.f32 %v811, %v829
  %v832 = vld [vmem:[%s6] sm:$0x1]
  %v833 = vmul.f32 %v804, %v831
  %v834 = vsub.f32 %v832, %v833
  %v836 = vlaneseq
  %v837 = vshrl.u32 %v836, 7
  %v838 = vsub.s32 0, %v837
  %v839 = vrot.slane %v834, %v838
  %v841 = vsel %vm224, %v831, %v839
  %v842 = vld [vmem:[%s10] sm:$0xff]
  %vm843 = vcmask 64512
  %v845 = vsel %vm843, %v841, 0
  %847 = vmatprep.subr.mxu0 0.0
  %848 = vmatpush1.msra.mxu0 %v842
  %849 = vmatprep.subr.mxu0 0.0
  %850 = vmatpush1.msra.mxu0 0.0
  %851 = vmatprep.subr.mxu0 0.0
  %852 = vmatpush1.msra.mxu0 0.0
  %853 = vmatprep.subr.mxu0 0.0
  %854 = vmatpush1.msra.mxu0 0.0
  %855 = vmatprep.subr.mxu0 0.0
  %856 = vmatpush1.msra.mxu0 0.0
  %857 = vmatprep.subr.mxu0 0.0
  %858 = vmatpush1.msra.mxu0 0.0
  %859 = vmatprep.subr.mxu0 0.0
  %860 = vmatpush1.msra.mxu0 0.0
  %861 = vmatprep.subr.mxu0 0.0
  %862 = vmatpush1.msra.mxu0 0.0
  %863 = vmatprep.subr.mxu0 0.0
  %864 = vmatpush1.msra.mxu0 0.0
  %865 = vmatprep.subr.mxu0 0.0
  %866 = vmatpush1.msra.mxu0 0.0
  %867 = vmatprep.subr.mxu0 0.0
  %868 = vmatpush1.msra.mxu0 0.0
  %869 = vmatprep.subr.mxu0 0.0
  %870 = vmatpush1.msra.mxu0 0.0
  %871 = vmatprep.subr.mxu0 0.0
  %872 = vmatpush1.msra.mxu0 0.0
  %873 = vmatprep.subr.mxu0 0.0
  %874 = vmatpush1.msra.mxu0 0.0
  %875 = vmatprep.subr.mxu0 0.0
  %876 = vmatpush1.msra.mxu0 0.0
  %877 = vmatprep.subr.mxu0 0.0
  %878 = vmatpush1.msra.mxu0 0.0
  %879 = vmatprep.subr.mxu0 0.0
  %880 = vmatpush1.msra.mxu0 0.0
  %881 = vmatprep.subr.mxu0 0.0
  %882 = vmatpush1.msra.mxu0 0.0
  %883 = vmatprep.subr.mxu0 0.0
  %884 = vmatpush1.msra.mxu0 0.0
  %885 = vmatprep.subr.mxu0 0.0
  %886 = vmatpush1.msra.mxu0 0.0
  %887 = vmatprep.subr.mxu0 0.0
  %888 = vmatpush1.msra.mxu0 0.0
  %889 = vmatprep.subr.mxu0 0.0
  %890 = vmatpush1.msra.mxu0 0.0
  %891 = vmatprep.subr.mxu0 0.0
  %892 = vmatpush1.msra.mxu0 0.0
  %893 = vmatprep.subr.mxu0 0.0
  %894 = vmatpush1.msra.mxu0 0.0
  %895 = vmatprep.subr.mxu0 0.0
  %896 = vmatpush1.msra.mxu0 0.0
  %897 = vmatprep.subr.mxu0 0.0
  %898 = vmatpush1.msra.mxu0 0.0
  %899 = vmatprep.subr.mxu0 0.0
  %900 = vmatpush1.msra.mxu0 0.0
  %901 = vmatprep.subr.mxu0 0.0
  %902 = vmatpush1.msra.mxu0 0.0
  %903 = vmatprep.subr.mxu0 0.0
  %904 = vmatpush1.msra.mxu0 0.0
  %905 = vmatprep.subr.mxu0 0.0
  %906 = vmatpush1.msra.mxu0 0.0
  %907 = vmatprep.subr.mxu0 0.0
  %908 = vmatpush1.msra.mxu0 0.0
  %909 = vmatprep.subr.mxu0 0.0
  %910 = vmatpush1.msra.mxu0 0.0
  %911 = vmatprep.mubr.f32.mxu0 0.0
  %912 = vmatmul.mubr.f32.gmra.mrb[0].mxu0 %v845
  %v913 = vpop.f32.mrb[0].mxu0
  %v914 = vadd.f32 0.0, %v913
  %v915 = vpop.f32.mrb[0].mxu0
  %916 = vdwg.mxu0
  %v917 = vlaneseq
  %v918 = vshrl.u32 %v917, 7
  %v919 = vsub.s32 0, %v918
  %v920 = vrot.slane %v914, %v919
  %v921 = vmul.f32 %v677, %v920
  %v922 = vmul.f32 %v682, %v920
  %v923 = vmul.f32 %v687, %v920
  %v924 = vmul.f32 %v692, %v920
  %v925 = vlaneseq
  %v926 = vshrl.u32 %v925, 7
  %v927 = vsub.s32 1, %v926
  %v928 = vrot.slane %v914, %v927
  %v929 = vadd.f32 %v921, %v928
  %v930 = vadd.f32 %v922, %v928
  %v931 = vadd.f32 %v923, %v928
  %v932 = vadd.f32 %v924, %v928
  %v933 = vmax.f32 %v929, 0.0
  %v934 = vmax.f32 %v930, 0.0
  %v935 = vmax.f32 %v931, 0.0
  %v936 = vmax.f32 %v932, 0.0
  %937 = vst [vmem:[%s11] sm:$0xff] %v933
  %938 = vst [vmem:[%s11 + $0x8] sm:$0xff] %v934
  %939 = vst [vmem:[%s11 + $0x10] sm:$0xff] %v935
  %940 = vst [vmem:[%s11 + $0x18] sm:$0xff] %v936
  // Predicated region
  $region46: #{double_conv.1} parent=0 // pred_check
    _
  $region47: #{double_conv.1} parent=0 // pred_check_branch
    %942 = sbr.rel (0) target = $region49
  $region48: #{double_conv.1} parent=0 // pred_region
    _
  $region49: #{double_conv.1} parent=0 // pred_fallthru
    _
  // Predicated region
  $region50: #{double_conv.1} parent=0 // pred_check
    _
  $region51: #{double_conv.1} parent=0 // pred_check_branch
    %944 = sbr.rel (0) target = $region53
  $region52: #{double_conv.1} parent=0 // pred_region
    _
  $region53: #{double_conv.1} parent=0 // pred_fallthru
    _

</llo_original>
